<compile_context>
chip_gen: v7x
topology: tpu7x:2x2x1
jax: 0.10.0
libtpu: 0.0.40
codegen_flags: <defaults>
</compile_context>

<pallas_src>
import functools

import jax
import jax.numpy as jnp
from jax.experimental import pallas as pl
from jax.experimental.pallas import tpu as pltpu

_NORM_EPS = 1e-12                          # F.normalize default eps (see note above)
_EPS = 1e-5

_TARGET_TILE_BYTES = 4 * 1024 * 1024       # per-input padded bytes per grid step
_VMEM_TOTAL_BUDGET = 36 * 1024 * 1024      # inputs (2x2 buf) + f32 temps; v7x-safe
_VMEM_HEADROOM = 4 * 1024 * 1024           # output slabs, per-row temps, scratch

# Older jax releases expose the Mosaic params class as TPUCompilerParams.
_CompilerParams = getattr(pltpu, "CompilerParams", None) or getattr(
    pltpu, "TPUCompilerParams")


def _round_up(x, m):
    return ((x + m - 1) // m) * m


def _sublane_mult(itemsize):
    # Sublane packing multiple per dtype width (f32: 8, bf16: 16, int8/fp8: 32).
    return {4: 8, 2: 16, 1: 32}.get(itemsize, 8)


def _bytes_per_tile_row(width, e_item, t_item):
    """Real VMEM bytes needed per tile row: padded-lane inputs (double-buffered)
    plus tile-sized f32 intermediates (p/d/w and any sub-f32 -> f32 casts)."""
    padded_w = _round_up(width, 128)
    in_bytes = 2 * padded_w * (e_item + t_item)           # 2 pipeline buffers each
    n_temps = 3 + (1 if e_item < 4 else 0) + (1 if t_item < 4 else 0)
    return in_bytes + n_temps * padded_w * 4


def _pick_row_tile(n_rows, width, e_item, t_item, mult):
    """Row tile sized by bytes, not rows: >= ~4 MiB of padded input per grid
    step (so per-step overhead is negligible), capped by the VMEM budget and
    capped so the 'parallel' grid has >= 2 steps (v7x dual-TensorCore)."""
    padded_w = _round_up(width, 128)
    per_row = _bytes_per_tile_row(width, e_item, t_item)
    rt_budget = max(mult, (_VMEM_TOTAL_BUDGET // per_row) // mult * mult)
    rt_target = _round_up(
        max(1, _TARGET_TILE_BYTES // (padded_w * min(e_item, t_item))), mult)
    rt = min(rt_target, rt_budget)
    rt = min(rt, _round_up(n_rows, mult))                 # no point exceeding R
    if n_rows > mult:                                     # keep >= 2 grid steps
        rt = min(rt, _round_up((n_rows + 1) // 2, mult))
    return max(mult, rt)


def _ctx_loss_kernel(e_ref, t_ref, o_ref, *, inv_h, n_rows, row_tile, mask_rows):
    """Per-tile partial sum of -log(mean_W(exp((1 - d_tilde)/h)) + 1e-5).

    e_ref/t_ref: (row_tile, W) tiles of the [B*H, W] row views.
    o_ref:       (1, 8, 128) f32 block private to this grid step (partial sum
                 broadcast across it; the wrapper reads [:, 0, 0]).
    """
    e = e_ref[...].astype(jnp.float32)
    t = t_ref[...].astype(jnp.float32)

    # With a size-1 channel, F.normalize gives x / max(|x|, 1e-12), so the
    # cosine similarity is exactly sign(e)*sign(t) (0 if either value is 0).
    # Compute d = (1 - cos)/2 directly from the sign of the product: no divide.
    p = e * t
    d = jnp.where(p > 0.0, 0.0, jnp.where(p < 0.0, 1.0, 0.5))   # (TR, W)

    d_min = jnp.min(d, axis=-1, keepdims=True)                  # (TR, 1)
    inv_dmin = 1.0 / (d_min + _EPS)                             # per-row only
    w = jnp.exp((1.0 - d * inv_dmin) * inv_h)                   # (TR, W) on EUP
    m = jnp.mean(w, axis=-1, keepdims=True)                     # (TR, 1)
    per_row = -jnp.log(m + _EPS)                                # (TR, 1)

    if mask_rows:
        # Only emitted when R % row_tile != 0: zero contributions from the
        # unspecified rows of the ragged last tile (select kills NaN/garbage).
        row0 = pl.program_id(0) * row_tile
        rid = row0 + jax.lax.broadcasted_iota(jnp.int32, per_row.shape, 0)
        per_row = jnp.where(rid < n_rows, per_row, 0.0)

    o_ref[...] = jnp.broadcast_to(jnp.sum(per_row), o_ref.shape)


def contextual_loss_pallas(enhanced, target, weight=1.0, h=0.1, row_tile=None):
    """enhanced: [B, 1, H, W]; target: [B, H, W]. Returns scalar f32 loss."""
    B, C, H, W = enhanced.shape
    assert C == 1, "module's shape assert forces a single channel"
    assert target.shape == (B, H, W)

    R = B * H
    e_rows = enhanced.reshape(R, W)          # zero-copy row views
    t_rows = target.reshape(R, W)

    e_item = jnp.dtype(enhanced.dtype).itemsize
    t_item = jnp.dtype(target.dtype).itemsize
    mult = max(_sublane_mult(e_item), _sublane_mult(t_item))

    if row_tile is None:
        row_tile = _pick_row_tile(R, W, e_item, t_item, mult)
    else:
        row_tile = _round_up(int(row_tile), mult)

    num_tiles = (R + row_tile - 1) // row_tile
    mask_rows = (R % row_tile) != 0

    # Scoped-VMEM limit derived from the real (padded + temps) tile footprint.
    # Budgeted to stay <= ~40 MiB so it is portable to v7x (64 MiB physical);
    # v5e/v6e could go higher but measured gains beyond ~2-4 MiB tiles are tiny.
    needed = row_tile * _bytes_per_tile_row(W, e_item, t_item)
    vmem_limit = int(max(32 * 1024 * 1024, needed + _VMEM_HEADROOM))

    # h is a fixed module hyperparameter -> baked in as a compile-time constant.
    partials = pl.pallas_call(
        functools.partial(_ctx_loss_kernel, inv_h=1.0 / float(h), n_rows=R,
                          row_tile=row_tile, mask_rows=mask_rows),
        out_shape=jax.ShapeDtypeStruct((num_tiles, 8, 128), jnp.float32),
        grid=(num_tiles,),
        in_specs=[
            pl.BlockSpec((row_tile, W), lambda i: (i, 0)),
            pl.BlockSpec((row_tile, W), lambda i: (i, 0)),
        ],
        out_specs=pl.BlockSpec((1, 8, 128), lambda i: (i, 0, 0)),
        compiler_params=_CompilerParams(
            dimension_semantics=("parallel",),          # independent tiles
            vmem_limit_bytes=vmem_limit),
    )(e_rows, t_rows)

    # Final reduction over tiles, mean over (B, H) rows, module weight.
    return weight * (jnp.sum(partials[:, 0, 0]) / jnp.float32(R))


def _contextual_loss_ref(enhanced, target, weight=1.0, h=0.1):
    """Pure-JAX reference mirroring the PyTorch forward."""
    t = target[:, None, :, :]
    e_n = enhanced / jnp.maximum(
        jnp.sqrt(jnp.sum(enhanced ** 2, axis=1, keepdims=True)), _NORM_EPS)
    t_n = t / jnp.maximum(
        jnp.sqrt(jnp.sum(t ** 2, axis=1, keepdims=True)), _NORM_EPS)
    cos = jnp.einsum("bchw,bchw->bhw", e_n, t_n)
    d = (1.0 - cos) / 2.0
    d_min = jnp.min(d, axis=-1, keepdims=True)
    d_tilde = d / (d_min + _EPS)
    w = jnp.exp((1.0 - d_tilde) / h)
    return weight * jnp.mean(-jnp.log(jnp.mean(w, axis=-1) + _EPS))


if __name__ == "__main__":
    key = jax.random.PRNGKey(0)
    k1, k2, k3, k4 = jax.random.split(key, 4)

    # Case 1: narrow-W f32 spectrogram slice. R = B*H = 40; the auto picker
    # chooses a 24-row tile -> 2 'parallel' grid steps + ragged-tile masking.
    B, C, H, W = 2, 1, 20, 16
    enhanced = jax.random.normal(k1, (B, C, H, W), dtype=jnp.float32)
    target = jax.random.normal(k2, (B, H, W), dtype=jnp.float32)
    ref = _contextual_loss_ref(enhanced, target, weight=1.0, h=0.1)

    out = contextual_loss_pallas(enhanced, target, weight=1.0, h=0.1)
    out = jax.block_until_ready(out)
    assert jnp.allclose(out, ref, rtol=1e-5, atol=1e-5), (out, ref)

    # Case 1b: explicit tile that does not divide R (40 % 16 != 0): exercises a
    # 3-step parallel grid and the masked last tile.
    out_b = contextual_loss_pallas(enhanced, target, weight=1.0, h=0.1,
                                   row_tile=16)
    out_b = jax.block_until_ready(out_b)
    assert jnp.allclose(out_b, ref, rtol=1e-5, atol=1e-5), (out_b, ref)

    # Case 2: bf16 inputs (half the HBM traffic), lane-aligned W, weight != 1.
    B2, H2, W2 = 2, 24, 256
    e2 = jax.random.normal(k3, (B2, 1, H2, W2), dtype=jnp.float32)
    t2 = jax.random.normal(k4, (B2, H2, W2), dtype=jnp.float32)
    e2_bf = e2.astype(jnp.bfloat16)
    t2_bf = t2.astype(jnp.bfloat16)
    ref2 = _contextual_loss_ref(e2_bf.astype(jnp.float32),
                                t2_bf.astype(jnp.float32), weight=0.5, h=0.1)
    out2 = contextual_loss_pallas(e2_bf, t2_bf, weight=0.5, h=0.1)
    out2 = jax.block_until_ready(out2)
    assert jnp.allclose(out2, ref2, rtol=1e-4, atol=1e-4), (out2, ref2)

    print("KERNEL_OK")
</pallas_src>

<mosaic_0001>
module attributes {stable_mosaic.version = 11 : i64} {
  func.func @_ctx_loss_kernel(%arg0: i32, %arg1: memref<24x16xf32, #tpu.memory_space<vmem>>, %arg2: memref<24x16xf32, #tpu.memory_space<vmem>>, %arg3: memref<1x8x128xf32, #tpu.memory_space<vmem>>) attributes {dimension_semantics = [#tpu.dimension_semantics<parallel>], iteration_bounds = array<i64: 2>, scalar_prefetch = 0 : i64, scratch_operands = 0 : i64, tpu.core_type = #tpu.core_type<tc>, window_params = [{transform_indices = @transform_0, window_bounds = array<i64: 24, 16>}, {transform_indices = @transform_1, window_bounds = array<i64: 24, 16>}, {transform_indices = @transform_2, window_bounds = array<i64: 1, 8, 128>}]} {
    %c0 = arith.constant 0 : index
    %c0_0 = arith.constant 0 : index
    %0 = vector.load %arg1[%c0, %c0_0] : memref<24x16xf32, #tpu.memory_space<vmem>>, vector<24x16xf32>
    %c0_1 = arith.constant 0 : index
    %c0_2 = arith.constant 0 : index
    %1 = vector.load %arg2[%c0_1, %c0_2] : memref<24x16xf32, #tpu.memory_space<vmem>>, vector<24x16xf32>
    %2 = arith.mulf %0, %1 : vector<24x16xf32>
    %cst = arith.constant 0.000000e+00 : f32
    %3 = vector.broadcast %cst : f32 to vector<24x16xf32>
    %4 = arith.cmpf ogt, %2, %3 : vector<24x16xf32>
    %cst_3 = arith.constant 0.000000e+00 : f32
    %5 = vector.broadcast %cst_3 : f32 to vector<24x16xf32>
    %6 = arith.cmpf olt, %2, %5 : vector<24x16xf32>
    %cst_4 = arith.constant 1.000000e+00 : f32
    %cst_5 = arith.constant 5.000000e-01 : f32
    %7 = vector.broadcast %cst_4 : f32 to vector<24x16xf32>
    %8 = vector.broadcast %cst_5 : f32 to vector<24x16xf32>
    %9 = arith.select %6, %7, %8 : vector<24x16xi1>, vector<24x16xf32>
    %cst_6 = arith.constant 0.000000e+00 : f32
    %10 = vector.broadcast %cst_6 : f32 to vector<24x16xf32>
    %11 = arith.select %4, %10, %9 : vector<24x16xi1>, vector<24x16xf32>
    %cst_7 = arith.constant dense<0x7F800000> : vector<24xf32>
    %12 = vector.multi_reduction <minimumf>, %11, %cst_7 [1] : vector<24x16xf32> to vector<24xf32>
    %13 = vector.shape_cast %12 : vector<24xf32> to vector<24x1xf32>
    %cst_8 = arith.constant 9.99999974E-6 : f32
    %14 = vector.broadcast %cst_8 : f32 to vector<24x1xf32>
    %15 = arith.addf %13, %14 : vector<24x1xf32>
    %cst_9 = arith.constant 1.000000e+00 : f32
    %16 = vector.broadcast %cst_9 : f32 to vector<24x1xf32>
    %17 = arith.divf %16, %15 : vector<24x1xf32>
    %18 = vector.broadcast %17 : vector<24x1xf32> to vector<24x16xf32>
    %19 = arith.mulf %11, %18 : vector<24x16xf32>
    %cst_10 = arith.constant 1.000000e+00 : f32
    %20 = vector.broadcast %cst_10 : f32 to vector<24x16xf32>
    %21 = arith.subf %20, %19 : vector<24x16xf32>
    %cst_11 = arith.constant 1.000000e+01 : f32
    %22 = vector.broadcast %cst_11 : f32 to vector<24x16xf32>
    %23 = arith.mulf %21, %22 : vector<24x16xf32>
    %24 = math.exp %23 : vector<24x16xf32>
    %cst_12 = arith.constant dense<0.000000e+00> : vector<24xf32>
    %25 = vector.multi_reduction <add>, %24, %cst_12 [1] : vector<24x16xf32> to vector<24xf32>
    %26 = vector.shape_cast %25 : vector<24xf32> to vector<24x1xf32>
    %cst_13 = arith.constant 1.600000e+01 : f32
    %27 = vector.broadcast %cst_13 : f32 to vector<24x1xf32>
    %28 = arith.divf %26, %27 : vector<24x1xf32>
    %cst_14 = arith.constant 9.99999974E-6 : f32
    %29 = vector.broadcast %cst_14 : f32 to vector<24x1xf32>
    %30 = arith.addf %28, %29 : vector<24x1xf32>
    %31 = math.log %30 : vector<24x1xf32>
    %cst_15 = arith.constant 0.000000e+00 : f32
    %32 = vector.broadcast %cst_15 : f32 to vector<24x1xf32>
    %33 = arith.subf %32, %31 : vector<24x1xf32>
    %c24_i32 = arith.constant 24 : i32
    %34 = arith.muli %arg0, %c24_i32 : i32
    %35 = tpu.iota {dimensions = array<i32: 0>} : vector<24x1xi32>
    %36 = vector.broadcast %34 : i32 to vector<24x1xi32>
    %37 = arith.addi %36, %35 : vector<24x1xi32>
    %c40_i32 = arith.constant 40 : i32
    %38 = vector.broadcast %c40_i32 : i32 to vector<24x1xi32>
    %39 = arith.cmpi slt, %37, %38 : vector<24x1xi32>
    %cst_16 = arith.constant 0.000000e+00 : f32
    %40 = vector.broadcast %cst_16 : f32 to vector<24x1xf32>
    %41 = arith.select %39, %33, %40 : vector<24x1xi1>, vector<24x1xf32>
    %42 = vector.shape_cast %41 : vector<24x1xf32> to vector<1x24x1xf32>
    %cst_17 = arith.constant dense<0.000000e+00> : vector<1xf32>
    %43 = vector.multi_reduction <add>, %42, %cst_17 [1, 2] : vector<1x24x1xf32> to vector<1xf32>
    %44 = vector.shape_cast %43 : vector<1xf32> to vector<1x1x1xf32>
    %45 = vector.extract %44[0, 0, 0] : f32 from vector<1x1x1xf32>
    %46 = vector.broadcast %45 : f32 to vector<1x8x128xf32>
    %c0_18 = arith.constant 0 : index
    %c0_19 = arith.constant 0 : index
    %c0_20 = arith.constant 0 : index
    %47 = vector.load %arg3[%c0_18, %c0_19, %c0_20] : memref<1x8x128xf32, #tpu.memory_space<vmem>>, vector<1x8x128xf32>
    tpu.vector_store %arg3[%c0_18, %c0_19, %c0_20], %46 {strides = array<i32>} : memref<1x8x128xf32, #tpu.memory_space<vmem>>, vector<1x8x128xf32>,
    return
  }
  func.func @transform_0(%arg0: i32) -> (i32, i32) {
    %c0_i32 = arith.constant 0 : i32
    %c0_i32_0 = arith.constant 0 : i32
    return %arg0, %c0_i32 : i32, i32
  }
  func.func @transform_1(%arg0: i32) -> (i32, i32) {
    %c0_i32 = arith.constant 0 : i32
    %c0_i32_0 = arith.constant 0 : i32
    return %arg0, %c0_i32 : i32, i32
  }
  func.func @transform_2(%arg0: i32) -> (i32, i32, i32) {
    %c0_i32 = arith.constant 0 : i32
    %c0_i32_0 = arith.constant 0 : i32
    %c0_i32_1 = arith.constant 0 : i32
    return %arg0, %c0_i32, %c0_i32_0 : i32, i32, i32
  }
}

</mosaic_0001>

<llo_original>
// kernel: tpu_custom_call.1
$region0: #{tpu_custom_call.1}
  #allocation0 [shape = 'u32[]', space=smem, size = 0x4, offset = 0x4, fixed_abs, tag = 'smem constant byte address 0x4 - core index']
  #allocation1 [shape = 'u32[144,128]{1,0:T(1,128)}', space=vmem, size = 0x12000, scoped, tag = 'internal scratch']
  %s0 = inlined_call_operand.vmem [shape: f32[40,16], index: 0, kind: input, shape index: {}]
  %s1 = inlined_call_operand.vmem [shape: f32[40,16], index: 1, kind: input, shape index: {}]
  %s2 = inlined_call_operand.hbm [shape: f32[2,8,128], index: 2, kind: output, shape index: {}]
  %s3 = sld [smem:[#allocation0]]
  $region41: #{tpu_custom_call.1} parent=0
    _
  %s5 = ssub.s32 1, %s3
  %s6 = scalar_select 0, %s5, %s3
  $region1: #{tpu_custom_call.1} parent=0
    #allocation2 [shape = 'u8[8192]{0}', space=vmem, size = 0x2000, scoped, tag = 'output window, operand 0']
    #allocation3 [shape = 's32[2]{0}', space=sflag, size = 0x8, scoped, tag = 'scoped memory for tpu_custom_call.1']
    %7 = vsyncpa [#allocation3], 0
    %s8 = scalar_lea.sflag [#allocation3], 1
    %9 = vsyncpa %s8, 0
    loop: start=0, step=1, limit=4
    $region2: #{tpu_custom_call.1} parent=1 // loop_pre_header
      _
    $region3: #{tpu_custom_call.1} parent=1 // loop_header
      %s11 = sphi 0, %s15
      %p12 = scmp.ge.s32.totalorder %s11, 4
      %s21 = sphi 0, %s23
      %s24 = sphi 0, %s21
      %s25 = sphi 0, %s24
      %s41 = sphi 0, %s25
      %s47 = sphi 0, %s49
      %s50 = sphi 0, %s47
      %s51 = sphi 0, %s50
      %s67 = sphi 0, %s51
      %s73 = sphi 0, %s75
      %s76 = sphi 0, %s73
      %s77 = sphi 0, %s76
      %s93 = sphi 0, %s77
    $region4: #{tpu_custom_call.1} parent=1 // loop_header_branch
      %14 = sbr.rel (%p12) target = $region8
    $region5: #{tpu_custom_call.1} parent=1 // loop_body
      %s16 = ssub.s32 %s11, 1
      %s17 = ssub.s32 %s11, 2
      %s18 = sadd.s32 %s11, 1
      %s19 = ssub.s32 %s11, %s18
      %p20 = scmp.eq.s32.totalorder %s19, 0
      %s22 = sadd.s32 %s21, 1
      %s23 = scalar_select %p20, %s21, %s22
      %p26 = pneg %p20
      %p27 = scmp.eq.s32.totalorder %s11, 1
      %p28 = por %p26, %p27
      %p29 = scmp.ne.s32.totalorder %s21, %s24
      %p30 = scmp.eq.s32.totalorder %s11, 0
      %p31 = por %p29, %p30
      %p32 = scmp.ne.s32.totalorder %s21, %s24
      %p33 = scmp.eq.s32.totalorder %s16, 1
      %p34 = por %p32, %p33
      %p35 = scmp.ne.s32.totalorder %s24, %s25
      %p36 = scmp.eq.s32.totalorder %s16, 0
      %p37 = por %p35, %p36
      %p38 = scmp.ne.s32.totalorder %s24, %s25
      %p39 = scmp.eq.s32.totalorder %s17, 1
      %p40 = por %p38, %p39
      %p42 = scmp.ne.s32.totalorder %s25, %s41
      %p43 = scmp.eq.s32.totalorder %s17, 0
      %p44 = por %p42, %p43
      %s45 = ssub.s32 %s11, %s18
      %p46 = scmp.eq.s32.totalorder %s45, 0
      %s48 = sadd.s32 %s47, 1
      %s49 = scalar_select %p46, %s47, %s48
      %p52 = pneg %p46
      %p53 = scmp.eq.s32.totalorder %s11, 1
      %p54 = por %p52, %p53
      %p55 = scmp.ne.s32.totalorder %s47, %s50
      %p56 = scmp.eq.s32.totalorder %s11, 0
      %p57 = por %p55, %p56
      %p58 = scmp.ne.s32.totalorder %s47, %s50
      %p59 = scmp.eq.s32.totalorder %s16, 1
      %p60 = por %p58, %p59
      %p61 = scmp.ne.s32.totalorder %s50, %s51
      %p62 = scmp.eq.s32.totalorder %s16, 0
      %p63 = por %p61, %p62
      %p64 = scmp.ne.s32.totalorder %s50, %s51
      %p65 = scmp.eq.s32.totalorder %s17, 1
      %p66 = por %p64, %p65
      %p68 = scmp.ne.s32.totalorder %s51, %s67
      %p69 = scmp.eq.s32.totalorder %s17, 0
      %p70 = por %p68, %p69
      %s71 = ssub.s32 %s11, %s18
      %p72 = scmp.eq.s32.totalorder %s71, 0
      %s74 = sadd.s32 %s73, 1
      %s75 = scalar_select %p72, %s73, %s74
      %p78 = pneg %p72
      %p79 = scmp.eq.s32.totalorder %s11, 1
      %p80 = por %p78, %p79
      %p81 = scmp.ne.s32.totalorder %s73, %s76
      %p82 = scmp.eq.s32.totalorder %s11, 0
      %p83 = por %p81, %p82
      %p84 = scmp.ne.s32.totalorder %s73, %s76
      %p85 = scmp.eq.s32.totalorder %s16, 1
      %p86 = por %p84, %p85
      %p87 = scmp.ne.s32.totalorder %s76, %s77
      %p88 = scmp.eq.s32.totalorder %s16, 0
      %p89 = por %p87, %p88
      %p90 = scmp.ne.s32.totalorder %s76, %s77
      %p91 = scmp.eq.s32.totalorder %s17, 1
      %p92 = por %p90, %p91
      %p94 = scmp.ne.s32.totalorder %s77, %s93
      %p95 = scmp.eq.s32.totalorder %s17, 0
      %p96 = por %p94, %p95
      %p97 = scmp.le.s32.totalorder 1, %s11
      %p98 = scmp.lt.s32.totalorder %s11, 3
      %p99 = pnand %p97, %p98
      %p100 = pneg %p99
      // Predicated region
      $region9: #{tpu_custom_call.1} parent=5 // pred_check
        _
      $region10: #{tpu_custom_call.1} parent=5 // pred_check_branch
        %102 = sbr.rel (%p99) target = $region12
      $region11: #{tpu_custom_call.1} parent=5 // pred_region
        %s103 = ssub.s32 %s11, 1
      $region12: #{tpu_custom_call.1} parent=5 // pred_fallthru
        _
      %p104 = scmp.lt.s32.totalorder %s11, 2
      // Predicated region
      $region13: #{tpu_custom_call.1} parent=5 // pred_check
        %p105 = pneg %p104
      $region14: #{tpu_custom_call.1} parent=5 // pred_check_branch
        %107 = sbr.rel (%p105) target = $region16
      $region15: #{tpu_custom_call.1} parent=5 // pred_region
        // Predicated region
        $region17: #{tpu_custom_call.1} parent=15 // pred_check
          %p108 = pneg %p31
        $region18: #{tpu_custom_call.1} parent=15 // pred_check_branch
          %110 = sbr.rel (%p108) target = $region20
        $region19: #{tpu_custom_call.1} parent=15 // pred_region
          %s111 = smul.u32 3, %s11
          %s112 = ssub.s32 5, %s111
          %p113 = scmp.lt.s32.totalorder %s112, 3
          %s114 = scalar_select %p113, %s112, 3
          %s115 = smul.u32 128, %s114
          %p116 = scmp.lt.s32.totalorder %s111, 4
          %s117 = scalar_select %p116, %s111, 4
          %s118 = smul.addr %s117, 8
          %s119 = scalar_lea.vmem %s0, %s118
          %s120 = smul.u32 3, %s11
          %s121 = ssub.s32 5, %s120
          %p122 = scmp.lt.s32.totalorder %s121, 3
          %s123 = scalar_select %p122, %s121, 3
          %s124 = smul.u32 128, %s123
        $region20: #{tpu_custom_call.1} parent=15 // pred_fallthru
          _
        // Predicated region
        $region21: #{tpu_custom_call.1} parent=15 // pred_check
          %p125 = pneg %p57
        $region22: #{tpu_custom_call.1} parent=15 // pred_check_branch
          %127 = sbr.rel (%p125) target = $region24
        $region23: #{tpu_custom_call.1} parent=15 // pred_region
          %s128 = smul.u32 3, %s11
          %s129 = ssub.s32 5, %s128
          %p130 = scmp.lt.s32.totalorder %s129, 3
          %s131 = scalar_select %p130, %s129, 3
          %s132 = smul.u32 128, %s131
          %p133 = scmp.lt.s32.totalorder %s128, 4
          %s134 = scalar_select %p133, %s128, 4
          %s135 = smul.addr %s134, 8
          %s136 = scalar_lea.vmem %s1, %s135
          %s137 = smul.u32 3, %s11
          %s138 = ssub.s32 5, %s137
          %p139 = scmp.lt.s32.totalorder %s138, 3
          %s140 = scalar_select %p139, %s138, 3
          %s141 = smul.u32 128, %s140
        $region24: #{tpu_custom_call.1} parent=15 // pred_fallthru
          _
      $region16: #{tpu_custom_call.1} parent=5 // pred_fallthru
        _
      %p142 = scmp.le.s32.totalorder 1, %s11
      %p143 = scmp.lt.s32.totalorder %s11, 3
      %p144 = pnand %p142, %p143
      %p145 = pneg %p144
      // Predicated region
      $region25: #{tpu_custom_call.1} parent=5 // pred_check
        _
      $region26: #{tpu_custom_call.1} parent=5 // pred_check_branch
        %147 = sbr.rel (%p144) target = $region28
      $region27: #{tpu_custom_call.1} parent=5 // pred_region
        %s148 = ssub.s32 %s11, 1
        %s149 = smul.u32 3, %s16
        %s150 = ssub.s32 5, %s149
        %p151 = scmp.lt.s32.totalorder %s150, 3
        %s152 = scalar_select %p151, %s150, 3
        %s153 = smul.u32 128, %s152
        %p154 = scmp.lt.s32.totalorder %s149, 4
        %s155 = scalar_select %p154, %s149, 4
        %s156 = smul.addr %s155, 8
        %s157 = scalar_lea.vmem %s0, %s156
        %p158 = pneg %p37
        %p159 = pneg %p34
        %s160 = smul.u32 3, %s16
        %s161 = ssub.s32 5, %s160
        %p162 = scmp.lt.s32.totalorder %s161, 3
        %s163 = scalar_select %p162, %s161, 3
        %s164 = smul.u32 128, %s163
        %p165 = scmp.lt.s32.totalorder %s160, 4
        %s166 = scalar_select %p165, %s160, 4
        %s167 = smul.addr %s166, 8
        %s168 = scalar_lea.vmem %s1, %s167
        %p169 = pneg %p63
        %p170 = pneg %p60
        %p171 = pneg %p89
        %p172 = pneg %p86
        %s173 = sand.u32 %s76, 1
        %s174 = scalar_lea.sflag [#allocation3], %s173
        %s175 = sand.u32 %s76, 1
        %s176 = smul.addr %s175, 8
        %s177 = scalar_lea.vmem [#allocation2], %s176
        %s178 = smul.u32 3, %s16
        %s179 = ssub.s32 5, %s178
        %p180 = scmp.lt.s32.totalorder %s179, 3
        %s181 = scalar_select %p180, %s179, 3
        %s182 = smul.u32 128, %s181
        %p183 = scmp.lt.s32.totalorder %s178, 4
        %s184 = scalar_select %p183, %s178, 4
        %s185 = smul.addr %s184, 8
        %s186 = scalar_lea.vmem %s0, %s185
        %s187 = smul.u32 3, %s16
        %s188 = ssub.s32 5, %s187
        %p189 = scmp.lt.s32.totalorder %s188, 3
        %s190 = scalar_select %p189, %s188, 3
        %s191 = smul.u32 128, %s190
        %s192 = smul.u32 3, %s16
        %s193 = ssub.s32 5, %s192
        %p194 = scmp.lt.s32.totalorder %s193, 3
        %s195 = scalar_select %p194, %s193, 3
        %s196 = smul.u32 128, %s195
        %p197 = scmp.lt.s32.totalorder %s192, 4
        %s198 = scalar_select %p197, %s192, 4
        %s199 = smul.addr %s198, 8
        %s200 = scalar_lea.vmem %s1, %s199
        %s201 = smul.u32 3, %s16
        %s202 = ssub.s32 5, %s201
        %p203 = scmp.lt.s32.totalorder %s202, 3
        %s204 = scalar_select %p203, %s202, 3
        %s205 = smul.u32 128, %s204
        %v206 = vld [vmem:[%s186] sm:$0xff]
        %v207 = vld [vmem:[%s186 + $0x8] sm:$0xff]
        %v208 = vld [vmem:[%s186 + $0x10] sm:$0xff]
        %v209 = vld [vmem:[%s200] sm:$0xff]
        %v210 = vld [vmem:[%s200 + $0x8] sm:$0xff]
        %v211 = vld [vmem:[%s200 + $0x10] sm:$0xff]
        %v212 = vmul.f32 %v206, %v209
        %v213 = vmul.f32 %v207, %v210
        %v214 = vmul.f32 %v208, %v211
        %vm215 = vcmp.gt.f32.partialorder %v212, 0.0
        %vm216 = vcmp.gt.f32.partialorder %v213, 0.0
        %vm217 = vcmp.gt.f32.partialorder %v214, 0.0
        %vm218 = vcmp.lt.f32.partialorder %v212, 0.0
        %vm219 = vcmp.lt.f32.partialorder %v213, 0.0
        %vm220 = vcmp.lt.f32.partialorder %v214, 0.0
        %v221 = vsel %vm218, 1.0, 0.5
        %v222 = vsel %vm219, 1.0, 0.5
        %v223 = vsel %vm220, 1.0, 0.5
        %v224 = vsel %vm215, 0.0, %v221
        %v225 = vsel %vm216, 0.0, %v222
        %v226 = vsel %vm217, 0.0, %v223
        %vm227 = vcmask 130048
        %v228 = vsel %vm227, %v224, inf
        %229 = vmin.xlane.f32.xlu0 %v228
        %v230 = vpop.xlane.xlu0 %229
        %v231 = vsel %vm227, %v225, inf
        %232 = vmin.xlane.f32.xlu0 %v231
        %v233 = vpop.xlane.xlu0 %232
        %v234 = vsel %vm227, %v226, inf
        %235 = vmin.xlane.f32.xlu0 %v234
        %v236 = vpop.xlane.xlu0 %235
        %v237 = vadd.f32 %v230, 1e-05
        %v238 = vadd.f32 %v233, 1e-05
        %v239 = vadd.f32 %v236, 1e-05
        %v240 = vrcp.pop %v237
        %v241 = vmul.f32 1.0, %v240
        %v242 = vrcp.pop %v238
        %v243 = vmul.f32 1.0, %v242
        %v244 = vrcp.pop %v239
        %v245 = vmul.f32 1.0, %v244
        %v246 = vmul.f32 %v224, %v241
        %v247 = vmul.f32 %v225, %v243
        %v248 = vmul.f32 %v226, %v245
        %v249 = vsub.f32 1.0, %v246
        %v250 = vsub.f32 1.0, %v247
        %v251 = vsub.f32 1.0, %v248
        %v252 = vmul.f32 %v249, 10.0
        %v253 = vmul.f32 %v250, 10.0
        %v254 = vmul.f32 %v251, 10.0
        %v255 = vmul.f32 %v252, 1.442695
        %v256 = vpow.pop %v255
        %v257 = vmul.f32 %v253, 1.442695
        %v258 = vpow.pop %v257
        %v259 = vmul.f32 %v254, 1.442695
        %v260 = vpow.pop %v259
        %v261 = vsel %vm227, %v256, 0.0
        %262 = vadd.xlane.f32.xlu0 %v261
        %v263 = vpop.xlane.xlu0 %262
        %v264 = vsel %vm227, %v258, 0.0
        %265 = vadd.xlane.f32.xlu0 %v264
        %v266 = vpop.xlane.xlu0 %265
        %v267 = vsel %vm227, %v260, 0.0
        %268 = vadd.xlane.f32.xlu0 %v267
        %v269 = vpop.xlane.xlu0 %268
        %v270 = vrcp.pop 16.0
        %v271 = vmul.f32 %v263, %v270
        %v272 = vmul.f32 %v266, %v270
        %v273 = vmul.f32 %v269, %v270
        %v274 = vadd.f32 %v271, 1e-05
        %v275 = vadd.f32 %v272, 1e-05
        %v276 = vadd.f32 %v273, 1e-05
        %v277 = vlog2.pop %v274
        %v278 = vmul.f32 %v277, 0.6931472
        %v279 = vlog2.pop %v275
        %v280 = vmul.f32 %v279, 0.6931472
        %v281 = vlog2.pop %v276
        %v282 = vmul.f32 %v281, 0.6931472
        %v283 = vsub.f32 0.0, %v278
        %v284 = vsub.f32 0.0, %v280
        %v285 = vsub.f32 0.0, %v282
        %s286 = smul.u32 %s16, 24
        %v287 = vlaneseq
        %v288 = vshrl.u32 %v287, 7
        %v289 = vadd.s32 %v288, 8
        %v290 = vadd.s32 %v288, 16
        %v291 = vstv %s286
        %v292 = vadd.s32 %v291, %v288
        %v293 = vadd.s32 %v291, %v289
        %v294 = vadd.s32 %v291, %v290
        %vm295 = vcmp.lt.s32.totalorder %v292, 40
        %vm296 = vcmp.lt.s32.totalorder %v293, 40
        %vm297 = vcmp.lt.s32.totalorder %v294, 40
        %v298 = vsel %vm295, %v283, 0.0
        %v299 = vsel %vm296, %v284, 0.0
        %v300 = vsel %vm297, %v285, 0.0
        %vm301 = vcmask 7168
        %v302 = vsel %vm301, %v298, 0.0
        %v303 = vsel %vm301, %v299, 0.0
        %v304 = vadd.f32 %v302, %v303
        %v305 = vsel %vm301, %v300, 0.0
        %v306 = vadd.f32 %v304, %v305
        %307 = vadd.xlane.f32.xlu0 %v306
        %v308 = vpop.xlane.xlu0 %307
        %v309 = vrot.slane %v308, 4
        %v310 = vadd.f32 %v308, %v309
        %v311 = vrot.slane %v310, 2
        %v312 = vadd.f32 %v310, %v311
        %v313 = vrot.slane %v312, 1
        %v314 = vadd.f32 %v312, %v313
        %s315 = vtos %v314
        %v316 = vstv %s315
        %317 = vst [vmem:[%s177] sm:$0xff] %v316
        %s318 = sand.u32 %s76, 1
        %s319 = scalar_lea.sflag [#allocation3], %s318
        %s320 = sand.u32 %s76, 1
        %s321 = smul.addr %s320, 8
        %s322 = scalar_lea.vmem [#allocation2], %s321
        // Predicated region
        $region29: #{tpu_custom_call.1} parent=27 // pred_check
          %p323 = pneg %p86
        $region30: #{tpu_custom_call.1} parent=27 // pred_check_branch
          %325 = sbr.rel (%p323) target = $region32
        $region31: #{tpu_custom_call.1} parent=27 // pred_region
          %s327 = ssub.s32 128, 128
          %328 = vsyncadd %s319, %s327
          %s329 = smul.addr %s16, 128
          %s330 = scalar_lea.hbm %s2, %s329
          %s332 = sshll.u32 %s322, 4
          %s333 = int_to_ptr.vmem [resolvable:$true] %s332
          %335 = dma.vmem_to_hbm [thread:$0]  %s333, 128, %s330, %s319
        $region32: #{tpu_custom_call.1} parent=27 // pred_fallthru
          _
      $region28: #{tpu_custom_call.1} parent=5 // pred_fallthru
        _
      %p336 = scmp.le.s32.totalorder 2, %s11
      // Predicated region
      $region33: #{tpu_custom_call.1} parent=5 // pred_check
        %p337 = pneg %p336
      $region34: #{tpu_custom_call.1} parent=5 // pred_check_branch
        %339 = sbr.rel (%p337) target = $region36
      $region35: #{tpu_custom_call.1} parent=5 // pred_region
        %s340 = ssub.s32 %s11, 2
        // Predicated region
        $region37: #{tpu_custom_call.1} parent=35 // pred_check
          %p341 = pneg %p92
        $region38: #{tpu_custom_call.1} parent=35 // pred_check_branch
          %343 = sbr.rel (%p341) target = $region40
        $region39: #{tpu_custom_call.1} parent=35 // pred_region
          %s344 = sand.u32 %s77, 1
          %s345 = scalar_lea.sflag [#allocation3], %s344
          %s346 = sand.u32 %s77, 1
          %s347 = smul.addr %s346, 8
          %s348 = scalar_lea.vmem [#allocation2], %s347
          %349 = dma.done %s345, 128
        $region40: #{tpu_custom_call.1} parent=35 // pred_fallthru
          _
      $region36: #{tpu_custom_call.1} parent=5 // pred_fallthru
        _
    $region6: #{tpu_custom_call.1} parent=1 // loop_footer
      %s15 = sadd.s32 1, %s11
    $region7: #{tpu_custom_call.1} parent=1 // loop_footer_branch
      %10 = sbr.rel target = $region3
    $region8: #{tpu_custom_call.1} parent=1 // loop_exit
      _
    %350 = vsyncpa [#allocation3], 1
    %s351 = scalar_lea.sflag [#allocation3], 1
    %352 = vsyncpa %s351, 1

</llo_original>
